<compile_context>
chip_gen: v7x
topology: tpu7x:2x2x1
jax: 0.10.0
libtpu: 0.0.40
codegen_flags: <defaults>
</compile_context>

<pallas_src>
import jax
import jax.numpy as jnp
from jax import lax
from jax.experimental import pallas as pl
from jax.experimental.pallas import tpu as pltpu


def _make_kernel(temperature, tm, n, matmul_dtype):
    inv_t = float(1.0 / float(temperature))

    def kernel(q_ref, k_ref, out_ref, kn_ref):
        # q_ref block: (1, TM, C)  query row tile (un-normalized, matmul dtype)
        # k_ref block: (1, C, N)   full key block for batch element b (matmul dtype)
        # out_ref    : (1, 1) f32  single loss-sum accumulator, resident across grid
        # kn_ref     : (C, N)      VMEM scratch holding L1-normalized keys
        b = pl.program_id(0)
        r = pl.program_id(1)

        @pl.when((b == 0) & (r == 0))
        def _init():
            out_ref[...] = jnp.zeros_like(out_ref)

        @pl.when(r == 0)
        def _normalize_k():
            # F.normalize(p=1) along the channel axis, once per batch element.
            kf = k_ref[0].astype(jnp.float32)                               # (C, N)
            l1 = jnp.maximum(jnp.sum(jnp.abs(kf), axis=0, keepdims=True), 1e-12)
            kn_ref[...] = (kf / l1).astype(kn_ref.dtype)

        # F.normalize(p=1) of the query row tile, in f32.
        qf = q_ref[0].astype(jnp.float32)                                   # (TM, C)
        l1q = jnp.maximum(jnp.sum(jnp.abs(qf), axis=-1, keepdims=True), 1e-12)
        qn = (qf / l1q).astype(matmul_dtype)

        # s[t, j] = <q_t, k_j>: standard NN matmul on the MXU, f32 accumulation.
        s = jnp.dot(qn, kn_ref[...], preferred_element_type=jnp.float32)    # (TM, N)

        # masked_fill_ of the per-batch diagonal with -10.0 BEFORE the 1/T scale.
        # Global row index of local row t is r*TM + t.
        col = lax.broadcasted_iota(jnp.int32, (tm, n), 1)
        row = r * tm + lax.broadcasted_iota(jnp.int32, (tm, 1), 0)
        s = jnp.where(col == row, jnp.float32(-10.0), s)
        s = s * inv_t

        # CrossEntropy(target=0) over logits [0, s_row]:
        #   loss_row = logsumexp([0, s_row]) - 0
        m = jnp.maximum(jnp.max(s, axis=-1, keepdims=True), 0.0)            # (TM, 1)
        lse = m + jnp.log(jnp.exp(-m) +
                          jnp.sum(jnp.exp(s - m), axis=-1, keepdims=True))  # (TM, 1)

        out_ref[...] += jnp.sum(lse, keepdims=True)                         # (1, 1)

    return kernel


def _choose_row_tile(n):
    """MXU-aligned row tile (multiple of 128), capped so the (TM, N) f32 similarity
    tile stays ~4 MiB (comfortably inside v7x scoped VMEM)."""
    if n % 128 != 0:
        # TODO(synk): tile non-128-multiple patch counts (multiple-of-8 tiles + masking).
        return n
    tm = 256 if n % 256 == 0 else 128
    while tm > 128 and tm * n * 4 > 4 * 1024 * 1024:
        tm //= 2
    return min(tm, n)


def contrastive_loss_sup(feat_q, feat_k, temperature=0.07, base_temperature=0.07,
                         row_tile=None, matmul_dtype=jnp.bfloat16):
    """feat_q, feat_k: (B, C, H, W).  Returns the scalar PatchNCE supervised loss (f32).

    base_temperature is accepted for interface parity with the PyTorch module, which
    never reads it in forward()."""
    assert feat_q.shape == feat_k.shape, (feat_q.shape, feat_k.shape)
    B, C, H, W = feat_q.shape
    N = H * W

    tm = _choose_row_tile(N) if row_tile is None else int(row_tile)
    assert N % tm == 0, (N, tm)
    R = N // tm

    # q -> (B, N, C) so the kernel matmul is a plain (TM, C) @ (C, N); k stays in its
    # native (B, C, N) layout.  Cast to the matmul dtype (bf16 by default) before the
    # transpose to halve the moved bytes.
    q = feat_q.reshape(B, C, N).astype(matmul_dtype).transpose(0, 2, 1)
    k = lax.stop_gradient(feat_k).reshape(B, C, N).astype(matmul_dtype)   # .detach()

    in_bytes = jnp.dtype(matmul_dtype).itemsize
    vmem_estimate = (2 * tm * C * in_bytes        # q row tiles (double-buffered)
                     + 2 * C * N * in_bytes       # resident k block (double-buffered)
                     + C * N * in_bytes           # normalized-k scratch
                     + 6 * tm * N * 4             # s tile + elementwise temporaries
                     + 4 * 1024 * 1024)           # headroom
    vmem_limit = int(min(max(vmem_estimate, 32 * 1024 * 1024), 64 * 1024 * 1024))

    kernel = _make_kernel(temperature, tm, N, matmul_dtype)

    loss_sum = pl.pallas_call(
        kernel,
        out_shape=jax.ShapeDtypeStruct((1, 1), jnp.float32),
        grid_spec=pltpu.PrefetchScalarGridSpec(
            num_scalar_prefetch=0,
            grid=(B, R),
            in_specs=[
                pl.BlockSpec((1, tm, C), lambda b, r: (b, r, 0)),   # q row tile
                pl.BlockSpec((1, C, N), lambda b, r: (b, 0, 0)),    # resident k block
            ],
            out_specs=pl.BlockSpec((1, 1), lambda b, r: (0, 0)),    # scalar accumulator
            scratch_shapes=[pltpu.VMEM((C, N), matmul_dtype)],      # normalized keys
        ),
        compiler_params=pltpu.CompilerParams(
            dimension_semantics=("arbitrary", "arbitrary"),
            vmem_limit_bytes=vmem_limit),
    )(q, k)

    # TODO(synk): for very large N (>= ~8K) also tile the key/column axis with an
    # online (flash-style) logsumexp so live VMEM is O(TM*TN) instead of O(TM*N).
    # CrossEntropyLoss default reduction='mean' over all B*N rows.
    return loss_sum[0, 0] / jnp.float32(B * N)


def _reference_jax(feat_q, feat_k, temperature=0.07, matmul_dtype=jnp.float32):
    """Pure-JAX reference mirroring the PyTorch forward.  matmul_dtype=bf16 reproduces
    the kernel's MXU precision path; f32 is the PyTorch-faithful baseline."""
    B, C, H, W = feat_q.shape
    N = H * W
    q = feat_q.reshape(B, C, N).astype(matmul_dtype).astype(jnp.float32)
    k = feat_k.reshape(B, C, N).astype(matmul_dtype).astype(jnp.float32)
    q = q / jnp.maximum(jnp.sum(jnp.abs(q), axis=1, keepdims=True), 1e-12)
    k = k / jnp.maximum(jnp.sum(jnp.abs(k), axis=1, keepdims=True), 1e-12)
    l_neg = jnp.einsum("bcn,bcm->bnm",
                       q.astype(matmul_dtype), k.astype(matmul_dtype),
                       preferred_element_type=jnp.float32)
    eye = jnp.eye(N, dtype=bool)[None]
    l_neg = jnp.where(eye, -10.0, l_neg).reshape(-1, N).astype(jnp.float32)
    out = jnp.concatenate([jnp.zeros((B * N, 1), jnp.float32), l_neg], axis=1)
    out = out / temperature
    lse = jax.scipy.special.logsumexp(out, axis=1)
    return jnp.mean(lse - out[:, 0])


if __name__ == "__main__":
    key = jax.random.PRNGKey(0)
    kq, kk = jax.random.split(key)
    B, C, H, W = 2, 4, 16, 16          # N = 256 patches -> 2 row tiles of 128
    feat_q = jax.random.normal(kq, (B, C, H, W), dtype=jnp.float32)
    feat_k = jax.random.normal(kk, (B, C, H, W), dtype=jnp.float32)

    # bf16-MXU kernel (default) and a full-f32 kernel (PyTorch-faithful precision).
    loss_bf16 = jax.block_until_ready(
        contrastive_loss_sup(feat_q, feat_k, row_tile=128))
    loss_f32 = jax.block_until_ready(
        contrastive_loss_sup(feat_q, feat_k, row_tile=128, matmul_dtype=jnp.float32))

    ref_bf16 = jax.block_until_ready(
        _reference_jax(feat_q, feat_k, matmul_dtype=jnp.bfloat16))
    ref_f32 = jax.block_until_ready(
        _reference_jax(feat_q, feat_k, matmul_dtype=jnp.float32))

    assert jnp.isfinite(loss_bf16), loss_bf16
    assert jnp.isfinite(loss_f32), loss_f32
    # f32 kernel must match the PyTorch-faithful f32 reference tightly.
    assert abs(float(loss_f32) - float(ref_f32)) < 1e-4, (float(loss_f32), float(ref_f32))
    # bf16 kernel must match the matched-precision reference and stay close to f32.
    assert abs(float(loss_bf16) - float(ref_bf16)) < 2e-3, (float(loss_bf16), float(ref_bf16))
    assert abs(float(loss_bf16) - float(ref_f32)) < 5e-2, (float(loss_bf16), float(ref_f32))
    print("KERNEL_OK")
</pallas_src>

<mosaic_0001>
module attributes {stable_mosaic.version = 11 : i64} {
  func.func @kernel(%arg0: i32, %arg1: i32, %arg2: memref<1x128x4xbf16, #tpu.memory_space<vmem>>, %arg3: memref<1x4x256xbf16, #tpu.memory_space<vmem>>, %arg4: memref<1x1xf32, #tpu.memory_space<vmem>>, %arg5: memref<4x256xbf16, #tpu.memory_space<vmem>>) attributes {dimension_semantics = [#tpu.dimension_semantics<arbitrary>, #tpu.dimension_semantics<arbitrary>], iteration_bounds = array<i64: 2, 2>, scalar_prefetch = 0 : i64, scratch_operands = 1 : i64, tpu.core_type = #tpu.core_type<tc>, window_params = [{transform_indices = @transform_0, window_bounds = array<i64: 1, 128, 4>}, {transform_indices = @transform_1, window_bounds = array<i64: 1, 4, 256>}, {pipeline_mode = #tpu.pipeline_mode<synchronous>, transform_indices = @transform_2, window_bounds = array<i64: 1, 1>}]} {
    %c0_i32 = arith.constant 0 : i32
    %0 = arith.cmpi eq, %arg0, %c0_i32 : i32
    %c0_i32_0 = arith.constant 0 : i32
    %1 = arith.cmpi eq, %arg1, %c0_i32_0 : i32
    %2 = arith.andi %0, %1 : i1
    %3 = arith.extui %2 : i1 to i32
    %c0_i32_1 = arith.constant 0 : i32
    %4 = arith.cmpi ne, %3, %c0_i32_1 : i32
    scf.if %4 {
      %cst_21 = arith.constant 0.000000e+00 : f32
      %55 = vector.broadcast %cst_21 : f32 to vector<1x1xf32>
      %c0_22 = arith.constant 0 : index
      %c0_23 = arith.constant 0 : index
      %56 = vector.load %arg4[%c0_22, %c0_23] : memref<1x1xf32, #tpu.memory_space<vmem>>, vector<1x1xf32>
      tpu.vector_store %arg4[%c0_22, %c0_23], %55 {strides = array<i32>} : memref<1x1xf32, #tpu.memory_space<vmem>>, vector<1x1xf32>,
    } else {
    }
    %c0_i32_2 = arith.constant 0 : i32
    %5 = arith.cmpi eq, %arg1, %c0_i32_2 : i32
    %6 = arith.extui %5 : i1 to i32
    %c0_i32_3 = arith.constant 0 : i32
    %7 = arith.cmpi ne, %6, %c0_i32_3 : i32
    scf.if %7 {
      %c0_21 = arith.constant 0 : index
      %c0_22 = arith.constant 0 : index
      %c0_23 = arith.constant 0 : index
      %55 = vector.load %arg3[%c0_21, %c0_22, %c0_23] : memref<1x4x256xbf16, #tpu.memory_space<vmem>>, vector<1x4x256xbf16>
      %56 = vector.shape_cast %55 : vector<1x4x256xbf16> to vector<4x256xbf16>
      %57 = arith.extf %56 : vector<4x256xbf16> to vector<4x256xf32>
      %58 = math.absf %57 : vector<4x256xf32>
      %cst_24 = arith.constant dense<0.000000e+00> : vector<256xf32>
      %59 = vector.multi_reduction <add>, %58, %cst_24 [0] : vector<4x256xf32> to vector<256xf32>
      %60 = vector.shape_cast %59 : vector<256xf32> to vector<1x256xf32>
      %cst_25 = arith.constant 9.99999996E-13 : f32
      %61 = vector.broadcast %cst_25 : f32 to vector<1x256xf32>
      %62 = arith.maximumf %60, %61 : vector<1x256xf32>
      %63 = vector.broadcast %62 : vector<1x256xf32> to vector<4x256xf32>
      %64 = arith.divf %57, %63 : vector<4x256xf32>
      %65 = arith.truncf %64 : vector<4x256xf32> to vector<4x256xbf16>
      %c0_26 = arith.constant 0 : index
      %c0_27 = arith.constant 0 : index
      %66 = vector.load %arg5[%c0_26, %c0_27] : memref<4x256xbf16, #tpu.memory_space<vmem>>, vector<4x256xbf16>
      tpu.vector_store %arg5[%c0_26, %c0_27], %65 {strides = array<i32>} : memref<4x256xbf16, #tpu.memory_space<vmem>>, vector<4x256xbf16>,
    } else {
    }
    %c0 = arith.constant 0 : index
    %c0_4 = arith.constant 0 : index
    %c0_5 = arith.constant 0 : index
    %8 = vector.load %arg2[%c0, %c0_4, %c0_5] : memref<1x128x4xbf16, #tpu.memory_space<vmem>>, vector<1x128x4xbf16>
    %9 = vector.shape_cast %8 : vector<1x128x4xbf16> to vector<128x4xbf16>
    %10 = arith.extf %9 : vector<128x4xbf16> to vector<128x4xf32>
    %11 = math.absf %10 : vector<128x4xf32>
    %cst = arith.constant dense<0.000000e+00> : vector<128xf32>
    %12 = vector.multi_reduction <add>, %11, %cst [1] : vector<128x4xf32> to vector<128xf32>
    %13 = vector.shape_cast %12 : vector<128xf32> to vector<128x1xf32>
    %cst_6 = arith.constant 9.99999996E-13 : f32
    %14 = vector.broadcast %cst_6 : f32 to vector<128x1xf32>
    %15 = arith.maximumf %13, %14 : vector<128x1xf32>
    %16 = vector.broadcast %15 : vector<128x1xf32> to vector<128x4xf32>
    %17 = arith.divf %10, %16 : vector<128x4xf32>
    %18 = arith.truncf %17 : vector<128x4xf32> to vector<128x4xbf16>
    %c0_7 = arith.constant 0 : index
    %c0_8 = arith.constant 0 : index
    %19 = vector.load %arg5[%c0_7, %c0_8] : memref<4x256xbf16, #tpu.memory_space<vmem>>, vector<4x256xbf16>
    %cst_9 = arith.constant dense<0.000000e+00> : vector<128x256xf32>
    %20 = tpu.matmul %18, %19, %cst_9 {dimension_numbers = #tpu.dot_dimension_numbers<[1], [0], [0], [1], [0, 0, 1, 1], [], []>} : vector<128x4xbf16>, vector<4x256xbf16>, vector<128x256xf32> -> vector<128x256xf32>
    %21 = tpu.iota {dimensions = array<i32: 1>} : vector<128x256xi32>
    %c128_i32 = arith.constant 128 : i32
    %22 = arith.muli %arg1, %c128_i32 : i32
    %23 = tpu.iota {dimensions = array<i32: 0>} : vector<128x1xi32>
    %24 = vector.broadcast %22 : i32 to vector<128x1xi32>
    %25 = arith.addi %24, %23 : vector<128x1xi32>
    %26 = vector.broadcast %25 : vector<128x1xi32> to vector<128x256xi32>
    %27 = arith.cmpi eq, %21, %26 : vector<128x256xi32>
    %cst_10 = arith.constant -1.000000e+01 : f32
    %28 = vector.broadcast %cst_10 : f32 to vector<128x256xf32>
    %29 = arith.select %27, %28, %20 : vector<128x256xi1>, vector<128x256xf32>
    %cst_11 = arith.constant 14.2857141 : f32
    %30 = vector.broadcast %cst_11 : f32 to vector<128x256xf32>
    %31 = arith.mulf %29, %30 : vector<128x256xf32>
    %cst_12 = arith.constant dense<0xFF800000> : vector<128xf32>
    %32 = vector.multi_reduction <maximumf>, %31, %cst_12 [1] : vector<128x256xf32> to vector<128xf32>
    %33 = vector.shape_cast %32 : vector<128xf32> to vector<128x1xf32>
    %cst_13 = arith.constant 0.000000e+00 : f32
    %34 = vector.broadcast %cst_13 : f32 to vector<128x1xf32>
    %35 = arith.maximumf %33, %34 : vector<128x1xf32>
    %cst_14 = arith.constant 0.000000e+00 : f32
    %36 = vector.broadcast %cst_14 : f32 to vector<128x1xf32>
    %37 = arith.subf %36, %35 : vector<128x1xf32>
    %38 = math.exp %37 : vector<128x1xf32>
    %39 = vector.broadcast %35 : vector<128x1xf32> to vector<128x256xf32>
    %40 = arith.subf %31, %39 : vector<128x256xf32>
    %41 = math.exp %40 : vector<128x256xf32>
    %cst_15 = arith.constant dense<0.000000e+00> : vector<128xf32>
    %42 = vector.multi_reduction <add>, %41, %cst_15 [1] : vector<128x256xf32> to vector<128xf32>
    %43 = vector.shape_cast %42 : vector<128xf32> to vector<128x1xf32>
    %44 = arith.addf %38, %43 : vector<128x1xf32>
    %45 = math.log %44 : vector<128x1xf32>
    %46 = arith.addf %35, %45 : vector<128x1xf32>
    %c0_16 = arith.constant 0 : index
    %c0_17 = arith.constant 0 : index
    %47 = vector.load %arg4[%c0_16, %c0_17] : memref<1x1xf32, #tpu.memory_space<vmem>>, vector<1x1xf32>
    %48 = vector.shape_cast %46 : vector<128x1xf32> to vector<1x128x1xf32>
    %cst_18 = arith.constant dense<0.000000e+00> : vector<1xf32>
    %49 = vector.multi_reduction <add>, %48, %cst_18 [1, 2] : vector<1x128x1xf32> to vector<1xf32>
    %50 = vector.shape_cast %49 : vector<1xf32> to vector<1x1x1xf32>
    %51 = vector.extract %50[0, 0, 0] : f32 from vector<1x1x1xf32>
    %52 = vector.broadcast %51 : f32 to vector<1x1xf32>
    %53 = arith.addf %47, %52 : vector<1x1xf32>
    %c0_19 = arith.constant 0 : index
    %c0_20 = arith.constant 0 : index
    %54 = vector.load %arg4[%c0_19, %c0_20] : memref<1x1xf32, #tpu.memory_space<vmem>>, vector<1x1xf32>
    tpu.vector_store %arg4[%c0_19, %c0_20], %53 {strides = array<i32>} : memref<1x1xf32, #tpu.memory_space<vmem>>, vector<1x1xf32>,
    return
  }
  func.func @transform_0(%arg0: i32, %arg1: i32) -> (i32, i32, i32) {
    %c0_i32 = arith.constant 0 : i32
    %c0_i32_0 = arith.constant 0 : i32
    return %arg0, %arg1, %c0_i32 : i32, i32, i32
  }
  func.func @transform_1(%arg0: i32, %arg1: i32) -> (i32, i32, i32) {
    %c0_i32 = arith.constant 0 : i32
    %c0_i32_0 = arith.constant 0 : i32
    %c0_i32_1 = arith.constant 0 : i32
    return %arg0, %c0_i32, %c0_i32_0 : i32, i32, i32
  }
  func.func @transform_2(%arg0: i32, %arg1: i32) -> (i32, i32) {
    %c0_i32 = arith.constant 0 : i32
    %c0_i32_0 = arith.constant 0 : i32
    %c0_i32_1 = arith.constant 0 : i32
    return %c0_i32, %c0_i32_0 : i32, i32
  }
}

</mosaic_0001>

<llo_original>
// kernel: tpu_custom_call.1
$region0: #{tpu_custom_call.1}
  #allocation0 [shape = 'u32[]', space=smem, size = 0x4, offset = 0x4, fixed_abs, tag = 'smem constant byte address 0x4 - core index']
  #allocation1 [shape = 'u32[144,128]{1,0:T(1,128)}', space=vmem, size = 0x12000, scoped, tag = 'internal scratch']
  #allocation2 [shape = 'bf16[4,256]{1,0:T(4,128)(2,1)}', space=vmem, size = 0x800, scoped, tag = 'scratch operand']
  %s0 = inlined_call_operand.vmem [shape: bf16[2,256,4], index: 0, kind: input, shape index: {}]
  %s1 = inlined_call_operand.vmem [shape: bf16[2,4,256], index: 1, kind: input, shape index: {}]
  %s2 = inlined_call_operand.hbm [shape: f32[1,1], index: 2, kind: output, shape index: {}]
  %s3 = sld [smem:[#allocation0]]
  $region49: #{tpu_custom_call.1} parent=0
    _
  %s5 = ssub.s32 1, %s3
  %s6 = scalar_select 0, %s5, %s3
  $region1: #{tpu_custom_call.1} parent=0
    #allocation3 [shape = 'u8[512]{0}', space=vmem, size = 0x400, scoped, tag = 'output window, operand 0, single buffered']
    #allocation4 [shape = 's32[2]{0}', space=sflag, size = 0x8, scoped, tag = 'scoped memory for tpu_custom_call.1']
    %7 = vsyncpa [#allocation4], 0
    loop: start=0, step=1, limit=6
    $region2: #{tpu_custom_call.1} parent=1 // loop_pre_header
      _
    $region3: #{tpu_custom_call.1} parent=1 // loop_header
      %s9 = sphi 0, %s13
      %p10 = scmp.ge.s32.totalorder %s9, 6
      %s16 = sphi 0, %s28
      %s17 = sphi 0, %s24
      %s18 = sphi 0, %s16
      %s19 = sphi 0, %s17
      %s20 = sphi 0, %s18
      %s21 = sphi 0, %s19
      %s33 = sphi 0, %s35
      %s36 = sphi 0, %s33
      %s37 = sphi 0, %s36
      %s53 = sphi 0, %s37
      %s59 = sphi 0, %s61
      %s62 = sphi 0, %s59
      %s63 = sphi 0, %s62
      %s79 = sphi 0, %s63
      %s83 = sphi 0, %s83
      %s85 = sphi 0, %s83
      %s86 = sphi 0, %s85
      %s100 = sphi 0, %s86
    $region4: #{tpu_custom_call.1} parent=1 // loop_header_branch
      %12 = sbr.rel (%p10) target = $region8
    $region5: #{tpu_custom_call.1} parent=1 // loop_body
      %s14 = ssub.s32 %s9, 1
      %s15 = ssub.s32 %s9, 2
      %s22 = sadd.s32 1, %s17
      %p23 = scmp.ge.s32.totalorder %s22, 2
      %s24 = scalar_select %p23, 0, %s22
      %s25 = sadd.s32 1, %s16
      %s26 = scalar_select %p23, %s25, %s16
      %p27 = scmp.ge.s32.totalorder %s26, 2
      %s28 = scalar_select %p27, 0, %s26
      %s29 = ssub.s32 %s16, %s28
      %s30 = ssub.s32 %s17, %s24
      %s31 = sor.u32 %s29, %s30
      %p32 = scmp.eq.s32.totalorder %s31, 0
      %s34 = sadd.s32 %s33, 1
      %s35 = scalar_select %p32, %s33, %s34
      %p38 = pneg %p32
      %p39 = scmp.eq.s32.totalorder %s9, 3
      %p40 = por %p38, %p39
      %p41 = scmp.ne.s32.totalorder %s33, %s36
      %p42 = scmp.eq.s32.totalorder %s9, 0
      %p43 = por %p41, %p42
      %p44 = scmp.ne.s32.totalorder %s33, %s36
      %p45 = scmp.eq.s32.totalorder %s14, 3
      %p46 = por %p44, %p45
      %p47 = scmp.ne.s32.totalorder %s36, %s37
      %p48 = scmp.eq.s32.totalorder %s14, 0
      %p49 = por %p47, %p48
      %p50 = scmp.ne.s32.totalorder %s36, %s37
      %p51 = scmp.eq.s32.totalorder %s15, 3
      %p52 = por %p50, %p51
      %p54 = scmp.ne.s32.totalorder %s37, %s53
      %p55 = scmp.eq.s32.totalorder %s15, 0
      %p56 = por %p54, %p55
      %s57 = ssub.s32 %s16, %s28
      %p58 = scmp.eq.s32.totalorder %s57, 0
      %s60 = sadd.s32 %s59, 1
      %s61 = scalar_select %p58, %s59, %s60
      %p64 = pneg %p58
      %p65 = scmp.eq.s32.totalorder %s9, 3
      %p66 = por %p64, %p65
      %p67 = scmp.ne.s32.totalorder %s59, %s62
      %p68 = scmp.eq.s32.totalorder %s9, 0
      %p69 = por %p67, %p68
      %p70 = scmp.ne.s32.totalorder %s59, %s62
      %p71 = scmp.eq.s32.totalorder %s14, 3
      %p72 = por %p70, %p71
      %p73 = scmp.ne.s32.totalorder %s62, %s63
      %p74 = scmp.eq.s32.totalorder %s14, 0
      %p75 = por %p73, %p74
      %p76 = scmp.ne.s32.totalorder %s62, %s63
      %p77 = scmp.eq.s32.totalorder %s15, 3
      %p78 = por %p76, %p77
      %p80 = scmp.ne.s32.totalorder %s63, %s79
      %p81 = scmp.eq.s32.totalorder %s15, 0
      %p82 = por %p80, %p81
      %s84 = sadd.s32 %s83, 1
      %p87 = scmp.eq.s32.totalorder %s9, 3
      %p88 = scmp.ne.s32.totalorder %s83, %s85
      %p89 = scmp.eq.s32.totalorder %s9, 0
      %p90 = por %p88, %p89
      %p91 = scmp.ne.s32.totalorder %s83, %s85
      %p92 = scmp.eq.s32.totalorder %s14, 3
      %p93 = por %p91, %p92
      %p94 = scmp.ne.s32.totalorder %s85, %s86
      %p95 = scmp.eq.s32.totalorder %s14, 0
      %p96 = por %p94, %p95
      %p97 = scmp.ne.s32.totalorder %s85, %s86
      %p98 = scmp.eq.s32.totalorder %s15, 3
      %p99 = por %p97, %p98
      %p101 = scmp.ne.s32.totalorder %s86, %s100
      %p102 = scmp.eq.s32.totalorder %s15, 0
      %p103 = por %p101, %p102
      %p104 = scmp.le.s32.totalorder 1, %s9
      %p105 = scmp.lt.s32.totalorder %s9, 5
      %p106 = pnand %p104, %p105
      %p107 = pneg %p106
      // Predicated region
      $region9: #{tpu_custom_call.1} parent=5 // pred_check
        _
      $region10: #{tpu_custom_call.1} parent=5 // pred_check_branch
        %109 = sbr.rel (%p106) target = $region12
      $region11: #{tpu_custom_call.1} parent=5 // pred_region
        %s110 = ssub.s32 %s9, 1
      $region12: #{tpu_custom_call.1} parent=5 // pred_fallthru
        _
      %p111 = scmp.lt.s32.totalorder %s9, 4
      // Predicated region
      $region13: #{tpu_custom_call.1} parent=5 // pred_check
        %p112 = pneg %p111
      $region14: #{tpu_custom_call.1} parent=5 // pred_check_branch
        %114 = sbr.rel (%p112) target = $region16
      $region15: #{tpu_custom_call.1} parent=5 // pred_region
        // Predicated region
        $region17: #{tpu_custom_call.1} parent=15 // pred_check
          %p115 = pneg %p43
        $region18: #{tpu_custom_call.1} parent=15 // pred_check_branch
          %117 = sbr.rel (%p115) target = $region20
        $region19: #{tpu_custom_call.1} parent=15 // pred_region
          %s118 = smul.u32 16, %s17
          %p119 = scmp.lt.s32.totalorder %s16, 1
          %s120 = scalar_select %p119, %s16, 1
          %p121 = scmp.lt.s32.totalorder %s118, 31
          %s122 = scalar_select %p121, %s118, 31
          %s123 = smul.addr %s120, 32
          %s124 = sadd.s32 %s122, %s123
          %s125 = smul.addr %s124, 4
          %s126 = scalar_lea.vmem %s0, %s125
          %s127 = smul.u32 16, %s17
        $region20: #{tpu_custom_call.1} parent=15 // pred_fallthru
          _
        // Predicated region
        $region21: #{tpu_custom_call.1} parent=15 // pred_check
          %p128 = pneg %p69
        $region22: #{tpu_custom_call.1} parent=15 // pred_check_branch
          %130 = sbr.rel (%p128) target = $region24
        $region23: #{tpu_custom_call.1} parent=15 // pred_region
          %p131 = scmp.lt.s32.totalorder %s16, 1
          %s132 = scalar_select %p131, %s16, 1
          %s133 = smul.addr %s132, 2
          %s134 = smul.addr %s133, 2
          %s135 = scalar_lea.vmem %s1, %s134
        $region24: #{tpu_custom_call.1} parent=15 // pred_fallthru
          _
      $region16: #{tpu_custom_call.1} parent=5 // pred_fallthru
        _
      %p136 = scmp.le.s32.totalorder 1, %s9
      %p137 = scmp.lt.s32.totalorder %s9, 5
      %p138 = pnand %p136, %p137
      %p139 = pneg %p138
      // Predicated region
      $region25: #{tpu_custom_call.1} parent=5 // pred_check
        _
      $region26: #{tpu_custom_call.1} parent=5 // pred_check_branch
        %141 = sbr.rel (%p138) target = $region28
      $region27: #{tpu_custom_call.1} parent=5 // pred_region
        %s142 = ssub.s32 %s9, 1
        %s143 = smul.u32 16, %s19
        %p144 = scmp.lt.s32.totalorder %s18, 1
        %s145 = scalar_select %p144, %s18, 1
        %p146 = scmp.lt.s32.totalorder %s143, 31
        %s147 = scalar_select %p146, %s143, 31
        %s148 = smul.addr %s145, 32
        %s149 = sadd.s32 %s147, %s148
        %s150 = smul.addr %s149, 4
        %s151 = scalar_lea.vmem %s0, %s150
        %p152 = pneg %p49
        %p153 = pneg %p46
        %p154 = scmp.lt.s32.totalorder %s18, 1
        %s155 = scalar_select %p154, %s18, 1
        %s156 = smul.addr %s155, 2
        %s157 = smul.addr %s156, 2
        %s158 = scalar_lea.vmem %s1, %s157
        %p159 = pneg %p75
        %p160 = pneg %p72
        %p161 = pneg %p96
        %p162 = pneg %p93
        %s163 = smul.u32 16, %s19
        %p164 = scmp.lt.s32.totalorder %s18, 1
        %s165 = scalar_select %p164, %s18, 1
        %p166 = scmp.lt.s32.totalorder %s163, 31
        %s167 = scalar_select %p166, %s163, 31
        %s168 = smul.addr %s165, 32
        %s169 = sadd.s32 %s167, %s168
        %s170 = smul.addr %s169, 4
        %s171 = scalar_lea.vmem %s0, %s170
        %s172 = smul.u32 16, %s19
        %p173 = scmp.lt.s32.totalorder %s18, 1
        %s174 = scalar_select %p173, %s18, 1
        %s175 = smul.addr %s174, 2
        %s176 = smul.addr %s175, 2
        %s177 = scalar_lea.vmem %s1, %s176
        %p179 = scmp.eq.s32.totalorder %s18, 0
        %p180 = scmp.eq.s32.totalorder %s19, 0
        %p181 = pnand %p179, %p180
        %p182 = pneg %p181
        // Predicated region
        $region29: #{tpu_custom_call.1} parent=27 // pred_check
          _
        $region30: #{tpu_custom_call.1} parent=27 // pred_check_branch
          %184 = sbr.rel (%p181) target = $region32
        $region31: #{tpu_custom_call.1} parent=27 // pred_region
          %vm185 = vcmask 0
          %186 = vst.msk [vmem:[#allocation3] sm:$0x1] %vm185, 0.0
        $region32: #{tpu_custom_call.1} parent=27 // pred_fallthru
          _
        // Predicated region
        $region33: #{tpu_custom_call.1} parent=27 // pred_check
          %p187 = pneg %p180
        $region34: #{tpu_custom_call.1} parent=27 // pred_check_branch
          %189 = sbr.rel (%p187) target = $region36
        $region35: #{tpu_custom_call.1} parent=27 // pred_region
          %v190 = vld [vmem:[%s177] sm:$0xf]
          %v191 = vunpack.c.l.bf16 %v190
          %v192 = vand.u32 2147483647, %v191
          %v194 = vcombine.high %v192, %v192
          %vm196 = vcmask 1043456
          %v197 = vsel %vm196, %v192, 0.0
          %v198 = vrot.slane %v197, 4
          %v199 = vadd.f32 %v197, %v198
          %v200 = vrot.slane %v199, 2
          %v201 = vadd.f32 %v199, %v200
          %v202 = vrot.slane %v201, 1
          %v203 = vadd.f32 %v201, %v202
          %v204 = vsel %vm196, %v194, 0.0
          %v205 = vrot.slane %v204, 4
          %v206 = vadd.f32 %v204, %v205
          %v207 = vrot.slane %v206, 2
          %v208 = vadd.f32 %v206, %v207
          %v209 = vrot.slane %v208, 1
          %v210 = vadd.f32 %v208, %v209
          %v211 = vmax.f32 %v203, 1e-12
          %v212 = vmax.f32 %v210, 1e-12
          %v215 = vcombine.low %v211, %v212
          %v217 = vrcp.pop %v215
          %v218 = vmul.f32 %v191, %v217
          %v220 = vcombine.high %v218, %v218
          %v222 = vpack.c.bf16 %v218, %v218
          %v223 = vpack.c.bf16 %v220, %v220
          %v226 = vcombine.low %v222, %v223
          %v228 = vunpack.c.l.s4 1983009808
          %v229 = vunpack.c.0.s8 %v228
          %v230 = vlaneseq
          %v231 = vshrl.u32 %v230, 7
          %v232 = vsub.s32 %v229, %v231
          %v233 = vrot.slane %v226, %v232
          %235 = vst [vmem:[#allocation2] sm:$0xf] %v233
        $region36: #{tpu_custom_call.1} parent=27 // pred_fallthru
          _
        %v236 = vld [vmem:[%s171] sm:$0xf]
        %v237 = vld [vmem:[%s171 + $0x4] sm:$0xf]
        %v238 = vld [vmem:[%s171 + $0x8] sm:$0xf]
        %v239 = vld [vmem:[%s171 + $0xc] sm:$0xf]
        %v240 = vld [vmem:[%s171 + $0x10] sm:$0xf]
        %v241 = vld [vmem:[%s171 + $0x14] sm:$0xf]
        %v242 = vld [vmem:[%s171 + $0x18] sm:$0xf]
        %v243 = vld [vmem:[%s171 + $0x1c] sm:$0xf]
        %v244 = vld [vmem:[%s171 + $0x20] sm:$0xf]
        %v245 = vld [vmem:[%s171 + $0x24] sm:$0xf]
        %v246 = vld [vmem:[%s171 + $0x28] sm:$0xf]
        %v247 = vld [vmem:[%s171 + $0x2c] sm:$0xf]
        %v248 = vld [vmem:[%s171 + $0x30] sm:$0xf]
        %v249 = vld [vmem:[%s171 + $0x34] sm:$0xf]
        %v250 = vld [vmem:[%s171 + $0x38] sm:$0xf]
        %v251 = vld [vmem:[%s171 + $0x3c] sm:$0xf]
        %v252 = vunpack.c.l.bf16 %v236
        %v253 = vunpack.c.l.bf16 %v237
        %v254 = vunpack.c.l.bf16 %v238
        %v255 = vunpack.c.l.bf16 %v239
        %v256 = vunpack.c.l.bf16 %v240
        %v257 = vunpack.c.l.bf16 %v241
        %v258 = vunpack.c.l.bf16 %v242
        %v259 = vunpack.c.l.bf16 %v243
        %v260 = vunpack.c.l.bf16 %v244
        %v261 = vunpack.c.l.bf16 %v245
        %v262 = vunpack.c.l.bf16 %v246
        %v263 = vunpack.c.l.bf16 %v247
        %v264 = vunpack.c.l.bf16 %v248
        %v265 = vunpack.c.l.bf16 %v249
        %v266 = vunpack.c.l.bf16 %v250
        %v267 = vunpack.c.l.bf16 %v251
        %v268 = vand.u32 2147483647, %v252
        %v269 = vand.u32 2147483647, %v253
        %v270 = vand.u32 2147483647, %v254
        %v271 = vand.u32 2147483647, %v255
        %v272 = vand.u32 2147483647, %v256
        %v273 = vand.u32 2147483647, %v257
        %v274 = vand.u32 2147483647, %v258
        %v275 = vand.u32 2147483647, %v259
        %v276 = vand.u32 2147483647, %v260
        %v277 = vand.u32 2147483647, %v261
        %v278 = vand.u32 2147483647, %v262
        %v279 = vand.u32 2147483647, %v263
        %v280 = vand.u32 2147483647, %v264
        %v281 = vand.u32 2147483647, %v265
        %v282 = vand.u32 2147483647, %v266
        %v283 = vand.u32 2147483647, %v267
        %vm284 = vcmask 31744
        %v285 = vsel %vm284, %v268, 0.0
        %286 = vadd.xlane.f32.xlu0 %v285
        %v287 = vpop.xlane.xlu0 %286
        %v288 = vsel %vm284, %v269, 0.0
        %289 = vadd.xlane.f32.xlu0 %v288
        %v290 = vpop.xlane.xlu0 %289
        %v291 = vsel %vm284, %v270, 0.0
        %292 = vadd.xlane.f32.xlu0 %v291
        %v293 = vpop.xlane.xlu0 %292
        %v294 = vsel %vm284, %v271, 0.0
        %295 = vadd.xlane.f32.xlu0 %v294
        %v296 = vpop.xlane.xlu0 %295
        %v297 = vsel %vm284, %v272, 0.0
        %298 = vadd.xlane.f32.xlu0 %v297
        %v299 = vpop.xlane.xlu0 %298
        %v300 = vsel %vm284, %v273, 0.0
        %301 = vadd.xlane.f32.xlu0 %v300
        %v302 = vpop.xlane.xlu0 %301
        %v303 = vsel %vm284, %v274, 0.0
        %304 = vadd.xlane.f32.xlu0 %v303
        %v305 = vpop.xlane.xlu0 %304
        %v306 = vsel %vm284, %v275, 0.0
        %307 = vadd.xlane.f32.xlu0 %v306
        %v308 = vpop.xlane.xlu0 %307
        %v309 = vsel %vm284, %v276, 0.0
        %310 = vadd.xlane.f32.xlu0 %v309
        %v311 = vpop.xlane.xlu0 %310
        %v312 = vsel %vm284, %v277, 0.0
        %313 = vadd.xlane.f32.xlu0 %v312
        %v314 = vpop.xlane.xlu0 %313
        %v315 = vsel %vm284, %v278, 0.0
        %316 = vadd.xlane.f32.xlu0 %v315
        %v317 = vpop.xlane.xlu0 %316
        %v318 = vsel %vm284, %v279, 0.0
        %319 = vadd.xlane.f32.xlu0 %v318
        %v320 = vpop.xlane.xlu0 %319
        %v321 = vsel %vm284, %v280, 0.0
        %322 = vadd.xlane.f32.xlu0 %v321
        %v323 = vpop.xlane.xlu0 %322
        %v324 = vsel %vm284, %v281, 0.0
        %325 = vadd.xlane.f32.xlu0 %v324
        %v326 = vpop.xlane.xlu0 %325
        %v327 = vsel %vm284, %v282, 0.0
        %328 = vadd.xlane.f32.xlu0 %v327
        %v329 = vpop.xlane.xlu0 %328
        %v330 = vsel %vm284, %v283, 0.0
        %331 = vadd.xlane.f32.xlu0 %v330
        %v332 = vpop.xlane.xlu0 %331
        %v333 = vmax.f32 %v287, 1e-12
        %v334 = vmax.f32 %v290, 1e-12
        %v335 = vmax.f32 %v293, 1e-12
        %v336 = vmax.f32 %v296, 1e-12
        %v337 = vmax.f32 %v299, 1e-12
        %v338 = vmax.f32 %v302, 1e-12
        %v339 = vmax.f32 %v305, 1e-12
        %v340 = vmax.f32 %v308, 1e-12
        %v341 = vmax.f32 %v311, 1e-12
        %v342 = vmax.f32 %v314, 1e-12
        %v343 = vmax.f32 %v317, 1e-12
        %v344 = vmax.f32 %v320, 1e-12
        %v345 = vmax.f32 %v323, 1e-12
        %v346 = vmax.f32 %v326, 1e-12
        %v347 = vmax.f32 %v329, 1e-12
        %v348 = vmax.f32 %v332, 1e-12
        %v349 = vrcp.pop %v333
        %v350 = vmul.f32 %v252, %v349
        %v351 = vrcp.pop %v334
        %v352 = vmul.f32 %v253, %v351
        %v353 = vrcp.pop %v335
        %v354 = vmul.f32 %v254, %v353
        %v355 = vrcp.pop %v336
        %v356 = vmul.f32 %v255, %v355
        %v357 = vrcp.pop %v337
        %v358 = vmul.f32 %v256, %v357
        %v359 = vrcp.pop %v338
        %v360 = vmul.f32 %v257, %v359
        %v361 = vrcp.pop %v339
        %v362 = vmul.f32 %v258, %v361
        %v363 = vrcp.pop %v340
        %v364 = vmul.f32 %v259, %v363
        %v365 = vrcp.pop %v341
        %v366 = vmul.f32 %v260, %v365
        %v367 = vrcp.pop %v342
        %v368 = vmul.f32 %v261, %v367
        %v369 = vrcp.pop %v343
        %v370 = vmul.f32 %v262, %v369
        %v371 = vrcp.pop %v344
        %v372 = vmul.f32 %v263, %v371
        %v373 = vrcp.pop %v345
        %v374 = vmul.f32 %v264, %v373
        %v375 = vrcp.pop %v346
        %v376 = vmul.f32 %v265, %v375
        %v377 = vrcp.pop %v347
        %v378 = vmul.f32 %v266, %v377
        %v379 = vrcp.pop %v348
        %v380 = vmul.f32 %v267, %v379
        %v381 = vpack.c.bf16 %v352, %v350
        %v382 = vpack.c.bf16 %v356, %v354
        %v383 = vpack.c.bf16 %v360, %v358
        %v384 = vpack.c.bf16 %v364, %v362
        %v385 = vpack.c.bf16 %v368, %v366
        %v386 = vpack.c.bf16 %v372, %v370
        %v387 = vpack.c.bf16 %v376, %v374
        %v388 = vpack.c.bf16 %v380, %v378
        %v389 = vld [vmem:[#allocation2] sm:$0xf]
        %v392 = vunpack.c.l.s4 1983009808
        %v393 = vunpack.c.0.s8 %v392
        %v394 = vlaneseq
        %v395 = vshrl.u32 %v394, 7
        %v396 = vsub.s32 %v393, %v395
        %v397 = vrot.slane %v389, %v396
        %v398 = vcombine.high %v397, %v397
        %v400 = vsel %vm284, %v381, 0
        %v403 = vsel %vm284, %v382, 0
        %v406 = vsel %vm284, %v383, 0
        %v409 = vsel %vm284, %v384, 0
        %v412 = vsel %vm284, %v385, 0
        %v415 = vsel %vm284, %v386, 0
        %v418 = vsel %vm284, %v387, 0
        %v421 = vsel %vm284, %v388, 0
        %vm423 = vcmask 1041408
        %v425 = vsel %vm423, %v397, 0
        %v428 = vsel %vm423, %v398, 0
        %430 = vmatprep.subr.bf16.mxu0 %v428
        %431 = vmatpush1.bf16.msra.mxu0 %v425
        %432 = vmatprep.subr.bf16.mxu0 0
        %433 = vmatpush1.bf16.msra.mxu0 0
        %434 = vmatprep.subr.bf16.mxu0 0
        %435 = vmatpush1.bf16.msra.mxu0 0
        %436 = vmatprep.subr.bf16.mxu0 0
        %437 = vmatpush1.bf16.msra.mxu0 0
        %438 = vmatprep.subr.bf16.mxu0 0
        %439 = vmatpush1.bf16.msra.mxu0 0
        %440 = vmatprep.subr.bf16.mxu0 0
        %441 = vmatpush1.bf16.msra.mxu0 0
        %442 = vmatprep.subr.bf16.mxu0 0
        %443 = vmatpush1.bf16.msra.mxu0 0
        %444 = vmatprep.subr.bf16.mxu0 0
        %445 = vmatpush1.bf16.msra.mxu0 0
        %446 = vmatprep.subr.bf16.mxu0 0
        %447 = vmatpush1.bf16.msra.mxu0 0
        %448 = vmatprep.subr.bf16.mxu0 0
        %449 = vmatpush1.bf16.msra.mxu0 0
        %450 = vmatprep.subr.bf16.mxu0 0
        %451 = vmatpush1.bf16.msra.mxu0 0
        %452 = vmatprep.subr.bf16.mxu0 0
        %453 = vmatpush1.bf16.msra.mxu0 0
        %454 = vmatprep.subr.bf16.mxu0 0
        %455 = vmatpush1.bf16.msra.mxu0 0
        %456 = vmatprep.subr.bf16.mxu0 0
        %457 = vmatpush1.bf16.msra.mxu0 0
        %458 = vmatprep.subr.bf16.mxu0 0
        %459 = vmatpush1.bf16.msra.mxu0 0
        %460 = vmatprep.subr.bf16.mxu0 0
        %461 = vmatpush1.bf16.msra.mxu0 0
        %462 = vmatprep.mubr.bf16.mxu0 0
        %463 = vmatmul.mubr.bf16.gmra.mrb[0].mxu0 %v400
        %v464 = vpop.f32.mrb[0].mxu0
        %v465 = vadd.f32 0.0, %v464
        %v466 = vpop.f32.mrb[0].mxu0
        %v467 = vadd.f32 0.0, %v466
        %v468 = vpop.f32.mrb[0].mxu0
        %v469 = vadd.f32 0.0, %v468
        %v470 = vpop.f32.mrb[0].mxu0
        %v471 = vadd.f32 0.0, %v470
        %472 = vmatprep.mubr.bf16.mxu0 0
        %473 = vmatmul.mubr.bf16.gmra.mrb[0].mxu0 %v403
        %v474 = vpop.f32.mrb[0].mxu0
        %v475 = vadd.f32 0.0, %v474
        %v476 = vpop.f32.mrb[0].mxu0
        %v477 = vadd.f32 0.0, %v476
        %v478 = vpop.f32.mrb[0].mxu0
        %v479 = vadd.f32 0.0, %v478
        %v480 = vpop.f32.mrb[0].mxu0
        %v481 = vadd.f32 0.0, %v480
        %482 = vmatprep.mubr.bf16.mxu0 0
        %483 = vmatmul.mubr.bf16.gmra.mrb[0].mxu0 %v406
        %v484 = vpop.f32.mrb[0].mxu0
        %v485 = vadd.f32 0.0, %v484
        %v486 = vpop.f32.mrb[0].mxu0
        %v487 = vadd.f32 0.0, %v486
        %v488 = vpop.f32.mrb[0].mxu0
        %v489 = vadd.f32 0.0, %v488
        %v490 = vpop.f32.mrb[0].mxu0
        %v491 = vadd.f32 0.0, %v490
        %492 = vmatprep.mubr.bf16.mxu0 0
        %493 = vmatmul.mubr.bf16.gmra.mrb[0].mxu0 %v409
        %v494 = vpop.f32.mrb[0].mxu0
        %v495 = vadd.f32 0.0, %v494
        %v496 = vpop.f32.mrb[0].mxu0
        %v497 = vadd.f32 0.0, %v496
        %v498 = vpop.f32.mrb[0].mxu0
        %v499 = vadd.f32 0.0, %v498
        %v500 = vpop.f32.mrb[0].mxu0
        %v501 = vadd.f32 0.0, %v500
        %502 = vmatprep.mubr.bf16.mxu0 0
        %503 = vmatmul.mubr.bf16.gmra.mrb[0].mxu0 %v412
        %v504 = vpop.f32.mrb[0].mxu0
        %v505 = vadd.f32 0.0, %v504
        %v506 = vpop.f32.mrb[0].mxu0
        %v507 = vadd.f32 0.0, %v506
        %v508 = vpop.f32.mrb[0].mxu0
        %v509 = vadd.f32 0.0, %v508
        %v510 = vpop.f32.mrb[0].mxu0
        %v511 = vadd.f32 0.0, %v510
        %512 = vmatprep.mubr.bf16.mxu0 0
        %513 = vmatmul.mubr.bf16.gmra.mrb[0].mxu0 %v415
        %v514 = vpop.f32.mrb[0].mxu0
        %v515 = vadd.f32 0.0, %v514
        %v516 = vpop.f32.mrb[0].mxu0
        %v517 = vadd.f32 0.0, %v516
        %v518 = vpop.f32.mrb[0].mxu0
        %v519 = vadd.f32 0.0, %v518
        %v520 = vpop.f32.mrb[0].mxu0
        %v521 = vadd.f32 0.0, %v520
        %522 = vmatprep.mubr.bf16.mxu0 0
        %523 = vmatmul.mubr.bf16.gmra.mrb[0].mxu0 %v418
        %v524 = vpop.f32.mrb[0].mxu0
        %v525 = vadd.f32 0.0, %v524
        %v526 = vpop.f32.mrb[0].mxu0
        %v527 = vadd.f32 0.0, %v526
        %v528 = vpop.f32.mrb[0].mxu0
        %v529 = vadd.f32 0.0, %v528
        %v530 = vpop.f32.mrb[0].mxu0
        %v531 = vadd.f32 0.0, %v530
        %532 = vmatprep.mubr.bf16.mxu0 0
        %533 = vmatmul.mubr.bf16.gmra.mrb[0].mxu0 %v421
        %v534 = vpop.f32.mrb[0].mxu0
        %v535 = vadd.f32 0.0, %v534
        %v536 = vpop.f32.mrb[0].mxu0
        %v537 = vadd.f32 0.0, %v536
        %v538 = vpop.f32.mrb[0].mxu0
        %v539 = vadd.f32 0.0, %v538
        %v540 = vpop.f32.mrb[0].mxu0
        %v541 = vadd.f32 0.0, %v540
        %542 = vdwg.mxu0
        %v543 = vlaneseq
        %v544 = vand.u32 %v543, 127
        %v545 = vadd.s32 %v544, 128
        %s546 = smul.u32 %s19, 128
        %v547 = vlaneseq
        %v548 = vshrl.u32 %v547, 7
        %v549 = vadd.s32 %v548, 8
        %v550 = vadd.s32 %v548, 16
        %v551 = vadd.s32 %v548, 24
        %v552 = vadd.s32 %v548, 32
        %v553 = vadd.s32 %v548, 40
        %v554 = vadd.s32 %v548, 48
        %v555 = vadd.s32 %v548, 56
        %v556 = vadd.s32 %v548, 64
        %v557 = vadd.s32 %v548, 72
        %v558 = vadd.s32 %v548, 80
        %v559 = vadd.s32 %v548, 88
        %v560 = vadd.s32 %v548, 96
        %v561 = vadd.s32 %v548, 104
        %v562 = vadd.s32 %v548, 112
        %v563 = vadd.s32 %v548, 120
        %v564 = vstv %s546
        %v565 = vadd.s32 %v564, %v548
        %v566 = vadd.s32 %v564, %v549
        %v567 = vadd.s32 %v564, %v550
        %v568 = vadd.s32 %v564, %v551
        %v569 = vadd.s32 %v564, %v552
        %v570 = vadd.s32 %v564, %v553
        %v571 = vadd.s32 %v564, %v554
        %v572 = vadd.s32 %v564, %v555
        %v573 = vadd.s32 %v564, %v556
        %v574 = vadd.s32 %v564, %v557
        %v575 = vadd.s32 %v564, %v558
        %v576 = vadd.s32 %v564, %v559
        %v577 = vadd.s32 %v564, %v560
        %v578 = vadd.s32 %v564, %v561
        %v579 = vadd.s32 %v564, %v562
        %v580 = vadd.s32 %v564, %v563
        %vm581 = vcmp.eq.s32.totalorder %v544, %v565
        %vm582 = vcmp.eq.s32.totalorder %v545, %v565
        %vm583 = vcmp.eq.s32.totalorder %v544, %v566
        %vm584 = vcmp.eq.s32.totalorder %v545, %v566
        %vm585 = vcmp.eq.s32.totalorder %v544, %v567
        %vm586 = vcmp.eq.s32.totalorder %v545, %v567
        %vm587 = vcmp.eq.s32.totalorder %v544, %v568
        %vm588 = vcmp.eq.s32.totalorder %v545, %v568
        %vm589 = vcmp.eq.s32.totalorder %v544, %v569
        %vm590 = vcmp.eq.s32.totalorder %v545, %v569
        %vm591 = vcmp.eq.s32.totalorder %v544, %v570
        %vm592 = vcmp.eq.s32.totalorder %v545, %v570
        %vm593 = vcmp.eq.s32.totalorder %v544, %v571
        %vm594 = vcmp.eq.s32.totalorder %v545, %v571
        %vm595 = vcmp.eq.s32.totalorder %v544, %v572
        %vm596 = vcmp.eq.s32.totalorder %v545, %v572
        %vm597 = vcmp.eq.s32.totalorder %v544, %v573
        %vm598 = vcmp.eq.s32.totalorder %v545, %v573
        %vm599 = vcmp.eq.s32.totalorder %v544, %v574
        %vm600 = vcmp.eq.s32.totalorder %v545, %v574
        %vm601 = vcmp.eq.s32.totalorder %v544, %v575
        %vm602 = vcmp.eq.s32.totalorder %v545, %v575
        %vm603 = vcmp.eq.s32.totalorder %v544, %v576
        %vm604 = vcmp.eq.s32.totalorder %v545, %v576
        %vm605 = vcmp.eq.s32.totalorder %v544, %v577
        %vm606 = vcmp.eq.s32.totalorder %v545, %v577
        %vm607 = vcmp.eq.s32.totalorder %v544, %v578
        %vm608 = vcmp.eq.s32.totalorder %v545, %v578
        %vm609 = vcmp.eq.s32.totalorder %v544, %v579
        %vm610 = vcmp.eq.s32.totalorder %v545, %v579
        %vm611 = vcmp.eq.s32.totalorder %v544, %v580
        %vm612 = vcmp.eq.s32.totalorder %v545, %v580
        %v613 = vsel %vm581, -10.0, %v465
        %v614 = vsel %vm582, -10.0, %v467
        %v615 = vsel %vm583, -10.0, %v469
        %v616 = vsel %vm584, -10.0, %v471
        %v617 = vsel %vm585, -10.0, %v475
        %v618 = vsel %vm586, -10.0, %v477
        %v619 = vsel %vm587, -10.0, %v479
        %v620 = vsel %vm588, -10.0, %v481
        %v621 = vsel %vm589, -10.0, %v485
        %v622 = vsel %vm590, -10.0, %v487
        %v623 = vsel %vm591, -10.0, %v489
        %v624 = vsel %vm592, -10.0, %v491
        %v625 = vsel %vm593, -10.0, %v495
        %v626 = vsel %vm594, -10.0, %v497
        %v627 = vsel %vm595, -10.0, %v499
        %v628 = vsel %vm596, -10.0, %v501
        %v629 = vsel %vm597, -10.0, %v505
        %v630 = vsel %vm598, -10.0, %v507
        %v631 = vsel %vm599, -10.0, %v509
        %v632 = vsel %vm600, -10.0, %v511
        %v633 = vsel %vm601, -10.0, %v515
        %v634 = vsel %vm602, -10.0, %v517
        %v635 = vsel %vm603, -10.0, %v519
        %v636 = vsel %vm604, -10.0, %v521
        %v637 = vsel %vm605, -10.0, %v525
        %v638 = vsel %vm606, -10.0, %v527
        %v639 = vsel %vm607, -10.0, %v529
        %v640 = vsel %vm608, -10.0, %v531
        %v641 = vsel %vm609, -10.0, %v535
        %v642 = vsel %vm610, -10.0, %v537
        %v643 = vsel %vm611, -10.0, %v539
        %v644 = vsel %vm612, -10.0, %v541
        %v645 = vmul.f32 %v613, 14.285714
        %v646 = vmul.f32 %v614, 14.285714
        %v647 = vmul.f32 %v615, 14.285714
        %v648 = vmul.f32 %v616, 14.285714
        %v649 = vmul.f32 %v617, 14.285714
        %v650 = vmul.f32 %v618, 14.285714
        %v651 = vmul.f32 %v619, 14.285714
        %v652 = vmul.f32 %v620, 14.285714
        %v653 = vmul.f32 %v621, 14.285714
        %v654 = vmul.f32 %v622, 14.285714
        %v655 = vmul.f32 %v623, 14.285714
        %v656 = vmul.f32 %v624, 14.285714
        %v657 = vmul.f32 %v625, 14.285714
        %v658 = vmul.f32 %v626, 14.285714
        %v659 = vmul.f32 %v627, 14.285714
        %v660 = vmul.f32 %v628, 14.285714
        %v661 = vmul.f32 %v629, 14.285714
        %v662 = vmul.f32 %v630, 14.285714
        %v663 = vmul.f32 %v631, 14.285714
        %v664 = vmul.f32 %v632, 14.285714
        %v665 = vmul.f32 %v633, 14.285714
        %v666 = vmul.f32 %v634, 14.285714
        %v667 = vmul.f32 %v635, 14.285714
        %v668 = vmul.f32 %v636, 14.285714
        %v669 = vmul.f32 %v637, 14.285714
        %v670 = vmul.f32 %v638, 14.285714
        %v671 = vmul.f32 %v639, 14.285714
        %v672 = vmul.f32 %v640, 14.285714
        %v673 = vmul.f32 %v641, 14.285714
        %v674 = vmul.f32 %v642, 14.285714
        %v675 = vmul.f32 %v643, 14.285714
        %v676 = vmul.f32 %v644, 14.285714
        %v677 = vmax.f32 %v645, %v646
        %678 = vmax.xlane.f32.xlu0 %v677
        %v679 = vpop.xlane.xlu0 %678
        %v680 = vmax.f32 %v647, %v648
        %681 = vmax.xlane.f32.xlu0 %v680
        %v682 = vpop.xlane.xlu0 %681
        %v683 = vmax.f32 %v649, %v650
        %684 = vmax.xlane.f32.xlu0 %v683
        %v685 = vpop.xlane.xlu0 %684
        %v686 = vmax.f32 %v651, %v652
        %687 = vmax.xlane.f32.xlu0 %v686
        %v688 = vpop.xlane.xlu0 %687
        %v689 = vmax.f32 %v653, %v654
        %690 = vmax.xlane.f32.xlu0 %v689
        %v691 = vpop.xlane.xlu0 %690
        %v692 = vmax.f32 %v655, %v656
        %693 = vmax.xlane.f32.xlu0 %v692
        %v694 = vpop.xlane.xlu0 %693
        %v695 = vmax.f32 %v657, %v658
        %696 = vmax.xlane.f32.xlu0 %v695
        %v697 = vpop.xlane.xlu0 %696
        %v698 = vmax.f32 %v659, %v660
        %699 = vmax.xlane.f32.xlu0 %v698
        %v700 = vpop.xlane.xlu0 %699
        %v701 = vmax.f32 %v661, %v662
        %702 = vmax.xlane.f32.xlu0 %v701
        %v703 = vpop.xlane.xlu0 %702
        %v704 = vmax.f32 %v663, %v664
        %705 = vmax.xlane.f32.xlu0 %v704
        %v706 = vpop.xlane.xlu0 %705
        %v707 = vmax.f32 %v665, %v666
        %708 = vmax.xlane.f32.xlu0 %v707
        %v709 = vpop.xlane.xlu0 %708
        %v710 = vmax.f32 %v667, %v668
        %711 = vmax.xlane.f32.xlu0 %v710
        %v712 = vpop.xlane.xlu0 %711
        %v713 = vmax.f32 %v669, %v670
        %714 = vmax.xlane.f32.xlu0 %v713
        %v715 = vpop.xlane.xlu0 %714
        %v716 = vmax.f32 %v671, %v672
        %717 = vmax.xlane.f32.xlu0 %v716
        %v718 = vpop.xlane.xlu0 %717
        %v719 = vmax.f32 %v673, %v674
        %720 = vmax.xlane.f32.xlu0 %v719
        %v721 = vpop.xlane.xlu0 %720
        %v722 = vmax.f32 %v675, %v676
        %723 = vmax.xlane.f32.xlu0 %v722
        %v724 = vpop.xlane.xlu0 %723
        %v725 = vmax.f32 %v679, 0.0
        %v726 = vmax.f32 %v682, 0.0
        %v727 = vmax.f32 %v685, 0.0
        %v728 = vmax.f32 %v688, 0.0
        %v729 = vmax.f32 %v691, 0.0
        %v730 = vmax.f32 %v694, 0.0
        %v731 = vmax.f32 %v697, 0.0
        %v732 = vmax.f32 %v700, 0.0
        %v733 = vmax.f32 %v703, 0.0
        %v734 = vmax.f32 %v706, 0.0
        %v735 = vmax.f32 %v709, 0.0
        %v736 = vmax.f32 %v712, 0.0
        %v737 = vmax.f32 %v715, 0.0
        %v738 = vmax.f32 %v718, 0.0
        %v739 = vmax.f32 %v721, 0.0
        %v740 = vmax.f32 %v724, 0.0
        %v741 = vsub.f32 0.0, %v725
        %v742 = vsub.f32 0.0, %v726
        %v743 = vsub.f32 0.0, %v727
        %v744 = vsub.f32 0.0, %v728
        %v745 = vsub.f32 0.0, %v729
        %v746 = vsub.f32 0.0, %v730
        %v747 = vsub.f32 0.0, %v731
        %v748 = vsub.f32 0.0, %v732
        %v749 = vsub.f32 0.0, %v733
        %v750 = vsub.f32 0.0, %v734
        %v751 = vsub.f32 0.0, %v735
        %v752 = vsub.f32 0.0, %v736
        %v753 = vsub.f32 0.0, %v737
        %v754 = vsub.f32 0.0, %v738
        %v755 = vsub.f32 0.0, %v739
        %v756 = vsub.f32 0.0, %v740
        %v757 = vmul.f32 %v741, 1.442695
        %v758 = vpow.pop %v757
        %v759 = vmul.f32 %v742, 1.442695
        %v760 = vpow.pop %v759
        %v761 = vmul.f32 %v743, 1.442695
        %v762 = vpow.pop %v761
        %v763 = vmul.f32 %v744, 1.442695
        %v764 = vpow.pop %v763
        %v765 = vmul.f32 %v745, 1.442695
        %v766 = vpow.pop %v765
        %v767 = vmul.f32 %v746, 1.442695
        %v768 = vpow.pop %v767
        %v769 = vmul.f32 %v747, 1.442695
        %v770 = vpow.pop %v769
        %v771 = vmul.f32 %v748, 1.442695
        %v772 = vpow.pop %v771
        %v773 = vmul.f32 %v749, 1.442695
        %v774 = vpow.pop %v773
        %v775 = vmul.f32 %v750, 1.442695
        %v776 = vpow.pop %v775
        %v777 = vmul.f32 %v751, 1.442695
        %v778 = vpow.pop %v777
        %v779 = vmul.f32 %v752, 1.442695
        %v780 = vpow.pop %v779
        %v781 = vmul.f32 %v753, 1.442695
        %v782 = vpow.pop %v781
        %v783 = vmul.f32 %v754, 1.442695
        %v784 = vpow.pop %v783
        %v785 = vmul.f32 %v755, 1.442695
        %v786 = vpow.pop %v785
        %v787 = vmul.f32 %v756, 1.442695
        %v788 = vpow.pop %v787
        %v789 = vsub.f32 %v645, %v725
        %v790 = vsub.f32 %v646, %v725
        %v791 = vsub.f32 %v647, %v726
        %v792 = vsub.f32 %v648, %v726
        %v793 = vsub.f32 %v649, %v727
        %v794 = vsub.f32 %v650, %v727
        %v795 = vsub.f32 %v651, %v728
        %v796 = vsub.f32 %v652, %v728
        %v797 = vsub.f32 %v653, %v729
        %v798 = vsub.f32 %v654, %v729
        %v799 = vsub.f32 %v655, %v730
        %v800 = vsub.f32 %v656, %v730
        %v801 = vsub.f32 %v657, %v731
        %v802 = vsub.f32 %v658, %v731
        %v803 = vsub.f32 %v659, %v732
        %v804 = vsub.f32 %v660, %v732
        %v805 = vsub.f32 %v661, %v733
        %v806 = vsub.f32 %v662, %v733
        %v807 = vsub.f32 %v663, %v734
        %v808 = vsub.f32 %v664, %v734
        %v809 = vsub.f32 %v665, %v735
        %v810 = vsub.f32 %v666, %v735
        %v811 = vsub.f32 %v667, %v736
        %v812 = vsub.f32 %v668, %v736
        %v813 = vsub.f32 %v669, %v737
        %v814 = vsub.f32 %v670, %v737
        %v815 = vsub.f32 %v671, %v738
        %v816 = vsub.f32 %v672, %v738
        %v817 = vsub.f32 %v673, %v739
        %v818 = vsub.f32 %v674, %v739
        %v819 = vsub.f32 %v675, %v740
        %v820 = vsub.f32 %v676, %v740
        %v821 = vmul.f32 %v789, 1.442695
        %v822 = vpow.pop %v821
        %v823 = vmul.f32 %v790, 1.442695
        %v824 = vpow.pop %v823
        %v825 = vmul.f32 %v791, 1.442695
        %v826 = vpow.pop %v825
        %v827 = vmul.f32 %v792, 1.442695
        %v828 = vpow.pop %v827
        %v829 = vmul.f32 %v793, 1.442695
        %v830 = vpow.pop %v829
        %v831 = vmul.f32 %v794, 1.442695
        %v832 = vpow.pop %v831
        %v833 = vmul.f32 %v795, 1.442695
        %v834 = vpow.pop %v833
        %v835 = vmul.f32 %v796, 1.442695
        %v836 = vpow.pop %v835
        %v837 = vmul.f32 %v797, 1.442695
        %v838 = vpow.pop %v837
        %v839 = vmul.f32 %v798, 1.442695
        %v840 = vpow.pop %v839
        %v841 = vmul.f32 %v799, 1.442695
        %v842 = vpow.pop %v841
        %v843 = vmul.f32 %v800, 1.442695
        %v844 = vpow.pop %v843
        %v845 = vmul.f32 %v801, 1.442695
        %v846 = vpow.pop %v845
        %v847 = vmul.f32 %v802, 1.442695
        %v848 = vpow.pop %v847
        %v849 = vmul.f32 %v803, 1.442695
        %v850 = vpow.pop %v849
        %v851 = vmul.f32 %v804, 1.442695
        %v852 = vpow.pop %v851
        %v853 = vmul.f32 %v805, 1.442695
        %v854 = vpow.pop %v853
        %v855 = vmul.f32 %v806, 1.442695
        %v856 = vpow.pop %v855
        %v857 = vmul.f32 %v807, 1.442695
        %v858 = vpow.pop %v857
        %v859 = vmul.f32 %v808, 1.442695
        %v860 = vpow.pop %v859
        %v861 = vmul.f32 %v809, 1.442695
        %v862 = vpow.pop %v861
        %v863 = vmul.f32 %v810, 1.442695
        %v864 = vpow.pop %v863
        %v865 = vmul.f32 %v811, 1.442695
        %v866 = vpow.pop %v865
        %v867 = vmul.f32 %v812, 1.442695
        %v868 = vpow.pop %v867
        %v869 = vmul.f32 %v813, 1.442695
        %v870 = vpow.pop %v869
        %v871 = vmul.f32 %v814, 1.442695
        %v872 = vpow.pop %v871
        %v873 = vmul.f32 %v815, 1.442695
        %v874 = vpow.pop %v873
        %v875 = vmul.f32 %v816, 1.442695
        %v876 = vpow.pop %v875
        %v877 = vmul.f32 %v817, 1.442695
        %v878 = vpow.pop %v877
        %v879 = vmul.f32 %v818, 1.442695
        %v880 = vpow.pop %v879
        %v881 = vmul.f32 %v819, 1.442695
        %v882 = vpow.pop %v881
        %v883 = vmul.f32 %v820, 1.442695
        %v884 = vpow.pop %v883
        %v885 = vadd.f32 %v822, %v824
        %886 = vadd.xlane.f32.xlu0 %v885
        %v887 = vpop.xlane.xlu0 %886
        %v888 = vadd.f32 %v826, %v828
        %889 = vadd.xlane.f32.xlu0 %v888
        %v890 = vpop.xlane.xlu0 %889
        %v891 = vadd.f32 %v830, %v832
        %892 = vadd.xlane.f32.xlu0 %v891
        %v893 = vpop.xlane.xlu0 %892
        %v894 = vadd.f32 %v834, %v836
        %895 = vadd.xlane.f32.xlu0 %v894
        %v896 = vpop.xlane.xlu0 %895
        %v897 = vadd.f32 %v838, %v840
        %898 = vadd.xlane.f32.xlu0 %v897
        %v899 = vpop.xlane.xlu0 %898
        %v900 = vadd.f32 %v842, %v844
        %901 = vadd.xlane.f32.xlu0 %v900
        %v902 = vpop.xlane.xlu0 %901
        %v903 = vadd.f32 %v846, %v848
        %904 = vadd.xlane.f32.xlu0 %v903
        %v905 = vpop.xlane.xlu0 %904
        %v906 = vadd.f32 %v850, %v852
        %907 = vadd.xlane.f32.xlu0 %v906
        %v908 = vpop.xlane.xlu0 %907
        %v909 = vadd.f32 %v854, %v856
        %910 = vadd.xlane.f32.xlu0 %v909
        %v911 = vpop.xlane.xlu0 %910
        %v912 = vadd.f32 %v858, %v860
        %913 = vadd.xlane.f32.xlu0 %v912
        %v914 = vpop.xlane.xlu0 %913
        %v915 = vadd.f32 %v862, %v864
        %916 = vadd.xlane.f32.xlu0 %v915
        %v917 = vpop.xlane.xlu0 %916
        %v918 = vadd.f32 %v866, %v868
        %919 = vadd.xlane.f32.xlu0 %v918
        %v920 = vpop.xlane.xlu0 %919
        %v921 = vadd.f32 %v870, %v872
        %922 = vadd.xlane.f32.xlu0 %v921
        %v923 = vpop.xlane.xlu0 %922
        %v924 = vadd.f32 %v874, %v876
        %925 = vadd.xlane.f32.xlu0 %v924
        %v926 = vpop.xlane.xlu0 %925
        %v927 = vadd.f32 %v878, %v880
        %928 = vadd.xlane.f32.xlu0 %v927
        %v929 = vpop.xlane.xlu0 %928
        %v930 = vadd.f32 %v882, %v884
        %931 = vadd.xlane.f32.xlu0 %v930
        %v932 = vpop.xlane.xlu0 %931
        %v933 = vadd.f32 %v758, %v887
        %v934 = vadd.f32 %v760, %v890
        %v935 = vadd.f32 %v762, %v893
        %v936 = vadd.f32 %v764, %v896
        %v937 = vadd.f32 %v766, %v899
        %v938 = vadd.f32 %v768, %v902
        %v939 = vadd.f32 %v770, %v905
        %v940 = vadd.f32 %v772, %v908
        %v941 = vadd.f32 %v774, %v911
        %v942 = vadd.f32 %v776, %v914
        %v943 = vadd.f32 %v778, %v917
        %v944 = vadd.f32 %v780, %v920
        %v945 = vadd.f32 %v782, %v923
        %v946 = vadd.f32 %v784, %v926
        %v947 = vadd.f32 %v786, %v929
        %v948 = vadd.f32 %v788, %v932
        %v949 = vlog2.pop %v933
        %v950 = vmul.f32 %v949, 0.6931472
        %v951 = vlog2.pop %v934
        %v952 = vmul.f32 %v951, 0.6931472
        %v953 = vlog2.pop %v935
        %v954 = vmul.f32 %v953, 0.6931472
        %v955 = vlog2.pop %v936
        %v956 = vmul.f32 %v955, 0.6931472
        %v957 = vlog2.pop %v937
        %v958 = vmul.f32 %v957, 0.6931472
        %v959 = vlog2.pop %v938
        %v960 = vmul.f32 %v959, 0.6931472
        %v961 = vlog2.pop %v939
        %v962 = vmul.f32 %v961, 0.6931472
        %v963 = vlog2.pop %v940
        %v964 = vmul.f32 %v963, 0.6931472
        %v965 = vlog2.pop %v941
        %v966 = vmul.f32 %v965, 0.6931472
        %v967 = vlog2.pop %v942
        %v968 = vmul.f32 %v967, 0.6931472
        %v969 = vlog2.pop %v943
        %v970 = vmul.f32 %v969, 0.6931472
        %v971 = vlog2.pop %v944
        %v972 = vmul.f32 %v971, 0.6931472
        %v973 = vlog2.pop %v945
        %v974 = vmul.f32 %v973, 0.6931472
        %v975 = vlog2.pop %v946
        %v976 = vmul.f32 %v975, 0.6931472
        %v977 = vlog2.pop %v947
        %v978 = vmul.f32 %v977, 0.6931472
        %v979 = vlog2.pop %v948
        %v980 = vmul.f32 %v979, 0.6931472
        %v981 = vadd.f32 %v725, %v950
        %v982 = vadd.f32 %v726, %v952
        %v983 = vadd.f32 %v727, %v954
        %v984 = vadd.f32 %v728, %v956
        %v985 = vadd.f32 %v729, %v958
        %v986 = vadd.f32 %v730, %v960
        %v987 = vadd.f32 %v731, %v962
        %v988 = vadd.f32 %v732, %v964
        %v989 = vadd.f32 %v733, %v966
        %v990 = vadd.f32 %v734, %v968
        %v991 = vadd.f32 %v735, %v970
        %v992 = vadd.f32 %v736, %v972
        %v993 = vadd.f32 %v737, %v974
        %v994 = vadd.f32 %v738, %v976
        %v995 = vadd.f32 %v739, %v978
        %v996 = vadd.f32 %v740, %v980
        %v997 = vld [vmem:[#allocation3] sm:$0x1]
        %vm998 = vcmask 7168
        %v999 = vsel %vm998, %v981, 0.0
        %v1000 = vsel %vm998, %v982, 0.0
        %v1001 = vadd.f32 %v999, %v1000
        %v1002 = vsel %vm998, %v983, 0.0
        %v1003 = vadd.f32 %v1001, %v1002
        %v1004 = vsel %vm998, %v984, 0.0
        %v1005 = vadd.f32 %v1003, %v1004
        %v1006 = vsel %vm998, %v985, 0.0
        %v1007 = vadd.f32 %v1005, %v1006
        %v1008 = vsel %vm998, %v986, 0.0
        %v1009 = vadd.f32 %v1007, %v1008
        %v1010 = vsel %vm998, %v987, 0.0
        %v1011 = vadd.f32 %v1009, %v1010
        %v1012 = vsel %vm998, %v988, 0.0
        %v1013 = vadd.f32 %v1011, %v1012
        %v1014 = vsel %vm998, %v989, 0.0
        %v1015 = vadd.f32 %v1013, %v1014
        %v1016 = vsel %vm998, %v990, 0.0
        %v1017 = vadd.f32 %v1015, %v1016
        %v1018 = vsel %vm998, %v991, 0.0
        %v1019 = vadd.f32 %v1017, %v1018
        %v1020 = vsel %vm998, %v992, 0.0
        %v1021 = vadd.f32 %v1019, %v1020
        %v1022 = vsel %vm998, %v993, 0.0
        %v1023 = vadd.f32 %v1021, %v1022
        %v1024 = vsel %vm998, %v994, 0.0
        %v1025 = vadd.f32 %v1023, %v1024
        %v1026 = vsel %vm998, %v995, 0.0
        %v1027 = vadd.f32 %v1025, %v1026
        %v1028 = vsel %vm998, %v996, 0.0
        %v1029 = vadd.f32 %v1027, %v1028
        %1030 = vadd.xlane.f32.xlu0 %v1029
        %v1031 = vpop.xlane.xlu0 %1030
        %v1032 = vrot.slane %v1031, 4
        %v1033 = vadd.f32 %v1031, %v1032
        %v1034 = vrot.slane %v1033, 2
        %v1035 = vadd.f32 %v1033, %v1034
        %v1036 = vrot.slane %v1035, 1
        %v1037 = vadd.f32 %v1035, %v1036
        %s1038 = vtos %v1037
        %v1039 = vstv %s1038
        %v1040 = vadd.f32 %v997, %v1039
        %vm1041 = vcmask 0
        %1042 = vst.msk [vmem:[#allocation3] sm:$0x1] %vm1041, %v1040
        // Predicated region
        $region37: #{tpu_custom_call.1} parent=27 // pred_check
          %p1043 = pneg %p93
        $region38: #{tpu_custom_call.1} parent=27 // pred_check_branch
          %1045 = sbr.rel (%p1043) target = $region40
        $region39: #{tpu_custom_call.1} parent=27 // pred_region
          %s1047 = ssub.s32 16, 16
          %1048 = vsyncadd [#allocation4], %s1047
          %s1050 = sshll.u32 [#allocation3], 4
          %s1051 = int_to_ptr.vmem [resolvable:$true] %s1050
          %1053 = dma.vmem_to_hbm [thread:$0]  %s1051, 16, %s2, [#allocation4]
        $region40: #{tpu_custom_call.1} parent=27 // pred_fallthru
          _
        // Predicated region
        $region41: #{tpu_custom_call.1} parent=27 // pred_check
          %p1054 = pneg %p93
        $region42: #{tpu_custom_call.1} parent=27 // pred_check_branch
          %1056 = sbr.rel (%p1054) target = $region44
        $region43: #{tpu_custom_call.1} parent=27 // pred_region
          %1057 = dma.done [#allocation4], 16
        $region44: #{tpu_custom_call.1} parent=27 // pred_fallthru
          _
      $region28: #{tpu_custom_call.1} parent=5 // pred_fallthru
        _
      %p1058 = scmp.le.s32.totalorder 2, %s9
      // Predicated region
      $region45: #{tpu_custom_call.1} parent=5 // pred_check
        %p1059 = pneg %p1058
      $region46: #{tpu_custom_call.1} parent=5 // pred_check_branch
        %1061 = sbr.rel (%p1059) target = $region48
      $region47: #{tpu_custom_call.1} parent=5 // pred_region
        %s1062 = ssub.s32 %s9, 2
      $region48: #{tpu_custom_call.1} parent=5 // pred_fallthru
        _
    $region6: #{tpu_custom_call.1} parent=1 // loop_footer
      %s13 = sadd.s32 1, %s9
    $region7: #{tpu_custom_call.1} parent=1 // loop_footer_branch
      %8 = sbr.rel target = $region3
    $region8: #{tpu_custom_call.1} parent=1 // loop_exit
      _
    %1063 = vsyncpa [#allocation4], 1
    %s1064 = scalar_lea.sflag [#allocation4], 1
    %1065 = vsyncpa %s1064, 1

</llo_original>
